<compile_context>
chip_gen: v5e
topology: v5e:2x2
jax: 0.10.0
libtpu: 0.0.40
codegen_flags: <defaults>
</compile_context>

<pallas_src>
import numpy as np
import jax
import jax.numpy as jnp
from jax import lax
from jax.experimental import pallas as pl
from jax.experimental.pallas import tpu as pltpu

GN_MEAN = 0.0
GN_STD = 0.05
KEEP_YUV = (25, 9, 9)            # zig-zag coefficients kept per 8x8 block (Y,U,V)
MATMUL_DTYPE = jnp.bfloat16      # MXU operand dtype (accumulation stays f32)


# ----------------------------- parameter setup ------------------------------

def _dct8_matrix():
    """Orthonormal 8x8 DCT-II matrix D[i, x] (row = frequency, col = space)."""
    n = 8
    k = np.arange(n)[:, None].astype(np.float64)
    x = np.arange(n)[None, :].astype(np.float64)
    d = np.cos(np.pi * (2.0 * x + 1.0) * k / (2.0 * n))
    d[0, :] *= np.sqrt(1.0 / n)
    d[1:, :] *= np.sqrt(2.0 / n)
    return d.astype(np.float32)


def _zigzag_order(n=8):
    coords = [(i, j) for i in range(n) for j in range(n)]
    coords.sort(key=lambda p: (p[0] + p[1],
                               p[0] if (p[0] + p[1]) % 2 == 1 else -p[0]))
    return coords


def _block_dct_matrix(h):
    """(h, h) block-diagonal DCT operator: kron(I_{h/8}, DCT8)."""
    return np.kron(np.eye(h // 8, dtype=np.float32), _dct8_matrix())


def _keep_mask8(keep_yuv=KEEP_YUV):
    """(3, 8, 8) zig-zag keep masks for Y/U/V."""
    zz = _zigzag_order(8)
    m = np.zeros((3, 8, 8), dtype=np.float32)
    for c, keep in enumerate(keep_yuv):
        for idx, (i, j) in enumerate(zz):
            if idx < keep:
                m[c, i, j] = 1.0
    return m


def _keep_maskT_rows(h):
    """(3, 8, h) TRANSPOSED-layout mask template.

    The kernel holds coefficients as C^T (W-freq major, H-freq on lanes);
    maskT[c, j%8, i] == mask[c, i, j].  Only 3*8*H floats cross HBM.
    """
    m8 = _keep_mask8()
    return np.stack([np.tile(m8[c].T, (1, h // 8)) for c in range(3)], axis=0)


def _keep_mask_full(h, w):
    """(3, h, w) full mask (reference only)."""
    m8 = _keep_mask8()
    return np.stack([np.tile(m8[c], (h // 8, w // 8)) for c in range(3)], axis=0)


# --------------------------------- kernel -----------------------------------

def hybrid_attack_kernel(x_ref, noise_ref, maskt_ref, d_ref, o_ref):
    # x_ref     : (Bt, 3, H, W)   input image block
    # noise_ref : (Bt, 3, H, W)   standard-normal noise block
    # maskt_ref : (3, 8, H)  bf16 transposed zig-zag keep-mask template
    # d_ref     : (H, H)     bf16 block-diagonal DCT operator (H == W)
    # o_ref     : (Bt, 3, H, W)
    bt = x_ref.shape[0]
    h = x_ref.shape[2]
    w = x_ref.shape[3]

    x = x_ref[...].astype(jnp.float32)                 # (Bt,3,H,W)
    r, g, b = x[:, 0], x[:, 1], x[:, 2]

    # RGB -> YUV (BT.601), channel-major stack (3, Bt, H, W).
    y = 0.299 * r + 0.587 * g + 0.114 * b
    u = -0.14713 * r - 0.28886 * g + 0.436 * b
    v = 0.615 * r - 0.51499 * g - 0.10001 * b
    yuv = jnp.stack([y, u, v], axis=0)                 # (3,Bt,H,W) f32

    d = d_ref[...]                                     # (N,N) bf16, N = H = W

    # ---- forward block DCT:  C = D X D^T   (held as C^T, lane-contractions only)
    # stage 1: A = X @ D^T                (contract over W)
    a = lax.dot_general(
        yuv.reshape(3 * bt * h, w).astype(MATMUL_DTYPE), d,
        (((1,), (1,)), ((), ())), preferred_element_type=jnp.float32)
    # per-image minor-dim transpose: (3Bt, H, W) -> (3Bt, W, H)
    at = jnp.swapaxes(a.reshape(3 * bt, h, w), 1, 2)
    # stage 2: C^T = A^T @ D^T            (contract over H)
    ct = lax.dot_general(
        at.reshape(3 * bt * w, h).astype(MATMUL_DTYPE), d,
        (((1,), (1,)), ((), ())), preferred_element_type=jnp.float32)

    # zig-zag keep mask via stride-0 broadcast of the (3,8,H) template;
    # 0/1 mask is exact in bf16, applied after the bf16 cast.
    ct = ct.astype(MATMUL_DTYPE).reshape(3, bt * (w // 8), 8, h)
    ct = ct * maskt_ref[...][:, None, :, :]
    ct = ct.reshape(3 * bt * w, h)

    # ---- inverse block DCT:  X' = D^T (C o M) D
    # stage 3: S = (C o M)^T @ D          (contract over H-freq)
    s = lax.dot_general(ct, d, (((1,), (0,)), ((), ())),
                        preferred_element_type=jnp.float32)
    st = jnp.swapaxes(s.reshape(3 * bt, w, h), 1, 2)   # back to H-major
    # stage 4: X' = S^T @ D               (contract over W-freq)
    rec = lax.dot_general(
        st.reshape(3 * bt * h, w).astype(MATMUL_DTYPE), d,
        (((1,), (0,)), ((), ())), preferred_element_type=jnp.float32)
    rec = rec.reshape(3, bt, h, w)
    yr, ur, vr = rec[0], rec[1], rec[2]

    # ---- YUV -> RGB + Gaussian noise, per-channel writes (fewer live planes).
    noise = noise_ref[...].astype(jnp.float32)
    rr = yr + 1.13983 * vr + GN_STD * noise[:, 0]
    gg = yr - 0.39465 * ur - 0.58060 * vr + GN_STD * noise[:, 1]
    bb = yr + 2.03211 * ur + GN_STD * noise[:, 2]
    if GN_MEAN != 0.0:                                  # dead add folded away
        rr = rr + GN_MEAN
        gg = gg + GN_MEAN
        bb = bb + GN_MEAN
    o_ref[:, 0] = rr.astype(o_ref.dtype)
    o_ref[:, 1] = gg.astype(o_ref.dtype)
    o_ref[:, 2] = bb.astype(o_ref.dtype)


# -------------------------------- wrapper ------------------------------------

def _pick_batch_block(bsz, h, w):
    """Largest divisor of bsz whose per-step working set stays small in VMEM."""
    img_bytes = 3 * h * w * 4
    per_image_ws = 20 * img_bytes          # live temporaries + double-buffered I/O
    max_bt = max(1, (20 * 2**20) // per_image_ws)
    bt = 1
    for cand in range(1, bsz + 1):
        if bsz % cand == 0 and cand <= max_bt:
            bt = cand
    return bt, per_image_ws


def hybrid_attack(noise_and_cover, *, noise_key):
    """noise_and_cover = (encoded_image NCHW, cover_image NCHW).

    Returns the same tuple with the encoded image replaced by the attacked
    image (differentiable-JPEG approximation followed by Gaussian noise).
    """
    x, cover = noise_and_cover
    bsz, c, h, w = x.shape
    assert c == 3, "JpegCompression operates on 3-channel (RGB) images"
    assert h % 8 == 0 and w % 8 == 0 and h == w

    d = jnp.asarray(_block_dct_matrix(h), dtype=MATMUL_DTYPE)        # (H, H)
    maskt = jnp.asarray(_keep_maskT_rows(h), dtype=MATMUL_DTYPE)     # (3, 8, H)

    noise_dtype = x.dtype if jnp.issubdtype(x.dtype, jnp.floating) else jnp.float32
    noise = jax.random.normal(noise_key, x.shape, dtype=noise_dtype)

    bt, per_image_ws = _pick_batch_block(bsz, h, w)
    grid = (bsz // bt,)

    # VMEM budget: per-step working set + headroom, capped for v7x (64 MiB part).
    vmem_bytes = int(min(40 * 2**20, max(16 * 2**20, bt * per_image_ws + 8 * 2**20)))

    out = pl.pallas_call(
        hybrid_attack_kernel,
        out_shape=jax.ShapeDtypeStruct((bsz, c, h, w), x.dtype),
        grid_spec=pltpu.PrefetchScalarGridSpec(
            num_scalar_prefetch=0,
            grid=grid,
            in_specs=[
                pl.BlockSpec((bt, c, h, w), lambda i: (i, 0, 0, 0)),  # x
                pl.BlockSpec((bt, c, h, w), lambda i: (i, 0, 0, 0)),  # noise
                pl.BlockSpec((c, 8, h), lambda i: (0, 0, 0)),         # mask template
                pl.BlockSpec((h, h), lambda i: (0, 0)),               # D
            ],
            out_specs=pl.BlockSpec((bt, c, h, w), lambda i: (i, 0, 0, 0)),
        ),
        compiler_params=pltpu.CompilerParams(
            dimension_semantics=("parallel",),
            vmem_limit_bytes=vmem_bytes),
    )(x, noise, maskt, d)

    return out, cover


# --------------------------- pure-JAX reference -------------------------------

def _jpeg_reference(x):
    """f32 reference of the deterministic JPEG-approximation stage (no noise)."""
    _, _, h, w = x.shape
    d = jnp.asarray(_block_dct_matrix(h))                       # f32 (H,H)
    mask = jnp.asarray(_keep_mask_full(h, w))                   # (3,H,W)
    r, g, b = x[:, 0], x[:, 1], x[:, 2]
    y = 0.299 * r + 0.587 * g + 0.114 * b
    u = -0.14713 * r - 0.28886 * g + 0.436 * b
    v = 0.615 * r - 0.51499 * g - 0.10001 * b
    yuv = jnp.stack([y, u, v], axis=1)                          # (B,3,H,W)
    coef = jnp.einsum('ij,bcjw->bciw', d, yuv)                  # D X
    coef = jnp.einsum('bciw,kw->bcik', coef, d)                 # ... D^T
    coef = coef * mask[None]
    rec = jnp.einsum('ji,bcjw->bciw', d, coef)                  # D^T ...
    rec = jnp.einsum('bcij,jw->bciw', rec, d)                   # ... D
    yr, ur, vr = rec[:, 0], rec[:, 1], rec[:, 2]
    rr = yr + 1.13983 * vr
    gr = yr - 0.39465 * ur - 0.58060 * vr
    br = yr + 2.03211 * ur
    return jnp.stack([rr, gr, br], axis=1)


# ---------------------------------- main -------------------------------------

if __name__ == "__main__":
    key = jax.random.PRNGKey(0)
    k_img, k_cov, k_noise = jax.random.split(key, 3)

    B, C, H, W = 2, 3, 16, 16
    encoded = jax.random.uniform(k_img, (B, C, H, W), dtype=jnp.float32)
    cover = jax.random.uniform(k_cov, (B, C, H, W), dtype=jnp.float32)

    attacked, cover_out = hybrid_attack((encoded, cover), noise_key=k_noise)
    jax.block_until_ready(attacked)
    jax.block_until_ready(cover_out)

    assert attacked.shape == (B, C, H, W)
    assert attacked.dtype == jnp.float32
    assert bool(jnp.all(jnp.isfinite(attacked)))
    assert cover_out.shape == cover.shape

    # Residual vs. the deterministic JPEG stage should be the Gaussian noise
    # (std 0.05) plus small bf16-matmul error.  Loose, non-flaky bounds.
    diff = attacked - _jpeg_reference(encoded)
    assert float(jnp.max(jnp.abs(diff))) < 0.5
    assert abs(float(jnp.mean(diff))) < 0.03

    print("KERNEL_OK")
</pallas_src>

<mosaic_0001>
module attributes {stable_mosaic.version = 11 : i64} {
  func.func @hybrid_attack_kernel(%arg0: i32, %arg1: memref<2x3x16x16xf32, #tpu.memory_space<vmem>>, %arg2: memref<2x3x16x16xf32, #tpu.memory_space<vmem>>, %arg3: memref<3x8x16xbf16, #tpu.memory_space<vmem>>, %arg4: memref<16x16xbf16, #tpu.memory_space<vmem>>, %arg5: memref<2x3x16x16xf32, #tpu.memory_space<vmem>>) attributes {dimension_semantics = [#tpu.dimension_semantics<parallel>], iteration_bounds = array<i64: 1>, scalar_prefetch = 0 : i64, scratch_operands = 0 : i64, tpu.core_type = #tpu.core_type<tc>, window_params = [{transform_indices = @transform_0, window_bounds = array<i64: 2, 3, 16, 16>}, {transform_indices = @transform_1, window_bounds = array<i64: 2, 3, 16, 16>}, {pipeline_mode = #tpu.pipeline_mode<synchronous>, transform_indices = @transform_2, window_bounds = array<i64: 3, 8, 16>}, {pipeline_mode = #tpu.pipeline_mode<synchronous>, transform_indices = @transform_3, window_bounds = array<i64: 16, 16>}, {transform_indices = @transform_4, window_bounds = array<i64: 2, 3, 16, 16>}]} {
    %c0 = arith.constant 0 : index
    %c0_0 = arith.constant 0 : index
    %c0_1 = arith.constant 0 : index
    %c0_2 = arith.constant 0 : index
    %0 = vector.load %arg1[%c0, %c0_0, %c0_1, %c0_2] : memref<2x3x16x16xf32, #tpu.memory_space<vmem>>, vector<2x3x16x16xf32>
    %1 = vector.extract_strided_slice %0 {offsets = [0, 0, 0, 0], sizes = [2, 1, 16, 16], strides = [1, 1, 1, 1]} : vector<2x3x16x16xf32> to vector<2x1x16x16xf32>
    %2 = vector.shape_cast %1 : vector<2x1x16x16xf32> to vector<2x16x16xf32>
    %3 = vector.extract_strided_slice %0 {offsets = [0, 1, 0, 0], sizes = [2, 1, 16, 16], strides = [1, 1, 1, 1]} : vector<2x3x16x16xf32> to vector<2x1x16x16xf32>
    %4 = vector.shape_cast %3 : vector<2x1x16x16xf32> to vector<2x16x16xf32>
    %5 = vector.extract_strided_slice %0 {offsets = [0, 2, 0, 0], sizes = [2, 1, 16, 16], strides = [1, 1, 1, 1]} : vector<2x3x16x16xf32> to vector<2x1x16x16xf32>
    %6 = vector.shape_cast %5 : vector<2x1x16x16xf32> to vector<2x16x16xf32>
    %cst = arith.constant 2.990000e-01 : f32
    %7 = vector.broadcast %cst : f32 to vector<2x16x16xf32>
    %8 = arith.mulf %7, %2 : vector<2x16x16xf32>
    %cst_3 = arith.constant 5.870000e-01 : f32
    %9 = vector.broadcast %cst_3 : f32 to vector<2x16x16xf32>
    %10 = arith.mulf %9, %4 : vector<2x16x16xf32>
    %11 = arith.addf %8, %10 : vector<2x16x16xf32>
    %cst_4 = arith.constant 1.140000e-01 : f32
    %12 = vector.broadcast %cst_4 : f32 to vector<2x16x16xf32>
    %13 = arith.mulf %12, %6 : vector<2x16x16xf32>
    %14 = arith.addf %11, %13 : vector<2x16x16xf32>
    %cst_5 = arith.constant -1.471300e-01 : f32
    %15 = vector.broadcast %cst_5 : f32 to vector<2x16x16xf32>
    %16 = arith.mulf %15, %2 : vector<2x16x16xf32>
    %cst_6 = arith.constant 2.888600e-01 : f32
    %17 = vector.broadcast %cst_6 : f32 to vector<2x16x16xf32>
    %18 = arith.mulf %17, %4 : vector<2x16x16xf32>
    %19 = arith.subf %16, %18 : vector<2x16x16xf32>
    %cst_7 = arith.constant 4.360000e-01 : f32
    %20 = vector.broadcast %cst_7 : f32 to vector<2x16x16xf32>
    %21 = arith.mulf %20, %6 : vector<2x16x16xf32>
    %22 = arith.addf %19, %21 : vector<2x16x16xf32>
    %cst_8 = arith.constant 6.150000e-01 : f32
    %23 = vector.broadcast %cst_8 : f32 to vector<2x16x16xf32>
    %24 = arith.mulf %23, %2 : vector<2x16x16xf32>
    %cst_9 = arith.constant 5.149900e-01 : f32
    %25 = vector.broadcast %cst_9 : f32 to vector<2x16x16xf32>
    %26 = arith.mulf %25, %4 : vector<2x16x16xf32>
    %27 = arith.subf %24, %26 : vector<2x16x16xf32>
    %cst_10 = arith.constant 1.000100e-01 : f32
    %28 = vector.broadcast %cst_10 : f32 to vector<2x16x16xf32>
    %29 = arith.mulf %28, %6 : vector<2x16x16xf32>
    %30 = arith.subf %27, %29 : vector<2x16x16xf32>
    %31 = vector.shape_cast %14 : vector<2x16x16xf32> to vector<1x2x16x16xf32>
    %32 = vector.shape_cast %22 : vector<2x16x16xf32> to vector<1x2x16x16xf32>
    %33 = vector.shape_cast %30 : vector<2x16x16xf32> to vector<1x2x16x16xf32>
    %34 = tpu.concatenate %31, %32, %33 in 0 : vector<1x2x16x16xf32>, vector<1x2x16x16xf32>, vector<1x2x16x16xf32> -> vector<3x2x16x16xf32>
    %c0_11 = arith.constant 0 : index
    %c0_12 = arith.constant 0 : index
    %35 = vector.load %arg4[%c0_11, %c0_12] : memref<16x16xbf16, #tpu.memory_space<vmem>>, vector<16x16xbf16>
    %36 = vector.shape_cast %34 : vector<3x2x16x16xf32> to vector<96x16xf32>
    %37 = arith.truncf %36 : vector<96x16xf32> to vector<96x16xbf16>
    %cst_13 = arith.constant dense<0.000000e+00> : vector<96x16xf32>
    %38 = tpu.matmul %37, %35, %cst_13 {dimension_numbers = #tpu.dot_dimension_numbers<[1], [1], [0], [0], [0, 0, 1, 0], [], []>} : vector<96x16xbf16>, vector<16x16xbf16>, vector<96x16xf32> -> vector<96x16xf32>
    %39 = vector.shape_cast %38 : vector<96x16xf32> to vector<6x16x16xf32>
    %40 = tpu.transpose %39, [0, 2, 1] : vector<6x16x16xf32> -> vector<6x16x16xf32>
    %41 = vector.shape_cast %40 : vector<6x16x16xf32> to vector<96x16xf32>
    %42 = arith.truncf %41 : vector<96x16xf32> to vector<96x16xbf16>
    %cst_14 = arith.constant dense<0.000000e+00> : vector<96x16xf32>
    %43 = tpu.matmul %42, %35, %cst_14 {dimension_numbers = #tpu.dot_dimension_numbers<[1], [1], [0], [0], [0, 0, 1, 0], [], []>} : vector<96x16xbf16>, vector<16x16xbf16>, vector<96x16xf32> -> vector<96x16xf32>
    %44 = arith.truncf %43 : vector<96x16xf32> to vector<96x16xbf16>
    %45 = vector.shape_cast %44 : vector<96x16xbf16> to vector<3x4x8x16xbf16>
    %c0_15 = arith.constant 0 : index
    %c0_16 = arith.constant 0 : index
    %c0_17 = arith.constant 0 : index
    %46 = vector.load %arg3[%c0_15, %c0_16, %c0_17] : memref<3x8x16xbf16, #tpu.memory_space<vmem>>, vector<3x8x16xbf16>
    %47 = vector.shape_cast %46 : vector<3x8x16xbf16> to vector<3x1x8x16xbf16>
    %48 = vector.broadcast %47 : vector<3x1x8x16xbf16> to vector<3x4x8x16xbf16>
    %49 = arith.mulf %45, %48 : vector<3x4x8x16xbf16>
    %50 = vector.shape_cast %49 : vector<3x4x8x16xbf16> to vector<96x16xbf16>
    %cst_18 = arith.constant dense<0.000000e+00> : vector<96x16xf32>
    %51 = tpu.matmul %50, %35, %cst_18 {dimension_numbers = #tpu.dot_dimension_numbers<[1], [0], [0], [1], [0, 0, 1, 1], [], []>} : vector<96x16xbf16>, vector<16x16xbf16>, vector<96x16xf32> -> vector<96x16xf32>
    %52 = vector.shape_cast %51 : vector<96x16xf32> to vector<6x16x16xf32>
    %53 = tpu.transpose %52, [0, 2, 1] : vector<6x16x16xf32> -> vector<6x16x16xf32>
    %54 = vector.shape_cast %53 : vector<6x16x16xf32> to vector<96x16xf32>
    %55 = arith.truncf %54 : vector<96x16xf32> to vector<96x16xbf16>
    %cst_19 = arith.constant dense<0.000000e+00> : vector<96x16xf32>
    %56 = tpu.matmul %55, %35, %cst_19 {dimension_numbers = #tpu.dot_dimension_numbers<[1], [0], [0], [1], [0, 0, 1, 1], [], []>} : vector<96x16xbf16>, vector<16x16xbf16>, vector<96x16xf32> -> vector<96x16xf32>
    %57 = vector.shape_cast %56 : vector<96x16xf32> to vector<3x2x16x16xf32>
    %58 = vector.extract_strided_slice %57 {offsets = [0, 0, 0, 0], sizes = [1, 2, 16, 16], strides = [1, 1, 1, 1]} : vector<3x2x16x16xf32> to vector<1x2x16x16xf32>
    %59 = vector.shape_cast %58 : vector<1x2x16x16xf32> to vector<2x16x16xf32>
    %60 = vector.extract_strided_slice %57 {offsets = [1, 0, 0, 0], sizes = [1, 2, 16, 16], strides = [1, 1, 1, 1]} : vector<3x2x16x16xf32> to vector<1x2x16x16xf32>
    %61 = vector.shape_cast %60 : vector<1x2x16x16xf32> to vector<2x16x16xf32>
    %62 = vector.extract_strided_slice %57 {offsets = [2, 0, 0, 0], sizes = [1, 2, 16, 16], strides = [1, 1, 1, 1]} : vector<3x2x16x16xf32> to vector<1x2x16x16xf32>
    %63 = vector.shape_cast %62 : vector<1x2x16x16xf32> to vector<2x16x16xf32>
    %c0_20 = arith.constant 0 : index
    %c0_21 = arith.constant 0 : index
    %c0_22 = arith.constant 0 : index
    %c0_23 = arith.constant 0 : index
    %64 = vector.load %arg2[%c0_20, %c0_21, %c0_22, %c0_23] : memref<2x3x16x16xf32, #tpu.memory_space<vmem>>, vector<2x3x16x16xf32>
    %cst_24 = arith.constant 1.139830e+00 : f32
    %65 = vector.broadcast %cst_24 : f32 to vector<2x16x16xf32>
    %66 = arith.mulf %65, %63 : vector<2x16x16xf32>
    %67 = arith.addf %59, %66 : vector<2x16x16xf32>
    %68 = vector.extract_strided_slice %64 {offsets = [0, 0, 0, 0], sizes = [2, 1, 16, 16], strides = [1, 1, 1, 1]} : vector<2x3x16x16xf32> to vector<2x1x16x16xf32>
    %69 = vector.shape_cast %68 : vector<2x1x16x16xf32> to vector<2x16x16xf32>
    %cst_25 = arith.constant 5.000000e-02 : f32
    %70 = vector.broadcast %cst_25 : f32 to vector<2x16x16xf32>
    %71 = arith.mulf %70, %69 : vector<2x16x16xf32>
    %72 = arith.addf %67, %71 : vector<2x16x16xf32>
    %cst_26 = arith.constant 3.946500e-01 : f32
    %73 = vector.broadcast %cst_26 : f32 to vector<2x16x16xf32>
    %74 = arith.mulf %73, %61 : vector<2x16x16xf32>
    %75 = arith.subf %59, %74 : vector<2x16x16xf32>
    %cst_27 = arith.constant 5.806000e-01 : f32
    %76 = vector.broadcast %cst_27 : f32 to vector<2x16x16xf32>
    %77 = arith.mulf %76, %63 : vector<2x16x16xf32>
    %78 = arith.subf %75, %77 : vector<2x16x16xf32>
    %79 = vector.extract_strided_slice %64 {offsets = [0, 1, 0, 0], sizes = [2, 1, 16, 16], strides = [1, 1, 1, 1]} : vector<2x3x16x16xf32> to vector<2x1x16x16xf32>
    %80 = vector.shape_cast %79 : vector<2x1x16x16xf32> to vector<2x16x16xf32>
    %cst_28 = arith.constant 5.000000e-02 : f32
    %81 = vector.broadcast %cst_28 : f32 to vector<2x16x16xf32>
    %82 = arith.mulf %81, %80 : vector<2x16x16xf32>
    %83 = arith.addf %78, %82 : vector<2x16x16xf32>
    %cst_29 = arith.constant 2.032110e+00 : f32
    %84 = vector.broadcast %cst_29 : f32 to vector<2x16x16xf32>
    %85 = arith.mulf %84, %61 : vector<2x16x16xf32>
    %86 = arith.addf %59, %85 : vector<2x16x16xf32>
    %87 = vector.extract_strided_slice %64 {offsets = [0, 2, 0, 0], sizes = [2, 1, 16, 16], strides = [1, 1, 1, 1]} : vector<2x3x16x16xf32> to vector<2x1x16x16xf32>
    %88 = vector.shape_cast %87 : vector<2x1x16x16xf32> to vector<2x16x16xf32>
    %cst_30 = arith.constant 5.000000e-02 : f32
    %89 = vector.broadcast %cst_30 : f32 to vector<2x16x16xf32>
    %90 = arith.mulf %89, %88 : vector<2x16x16xf32>
    %91 = arith.addf %86, %90 : vector<2x16x16xf32>
    %c0_31 = arith.constant 0 : index
    %c0_32 = arith.constant 0 : index
    %c0_33 = arith.constant 0 : index
    %c0_34 = arith.constant 0 : index
    %92 = vector.load %arg5[%c0_31, %c0_32, %c0_33, %c0_34] : memref<2x3x16x16xf32, #tpu.memory_space<vmem>>, vector<2x1x16x16xf32>
    %93 = vector.shape_cast %92 : vector<2x1x16x16xf32> to vector<2x16x16xf32>
    %94 = vector.shape_cast %72 : vector<2x16x16xf32> to vector<2x1x16x16xf32>
    tpu.vector_store %arg5[%c0_31, %c0_32, %c0_33, %c0_34], %94 {strides = array<i32>} : memref<2x3x16x16xf32, #tpu.memory_space<vmem>>, vector<2x1x16x16xf32>,
    %c0_35 = arith.constant 0 : index
    %c1 = arith.constant 1 : index
    %c0_36 = arith.constant 0 : index
    %c0_37 = arith.constant 0 : index
    %95 = vector.load %arg5[%c0_35, %c1, %c0_36, %c0_37] : memref<2x3x16x16xf32, #tpu.memory_space<vmem>>, vector<2x1x16x16xf32>
    %96 = vector.shape_cast %95 : vector<2x1x16x16xf32> to vector<2x16x16xf32>
    %97 = vector.shape_cast %83 : vector<2x16x16xf32> to vector<2x1x16x16xf32>
    tpu.vector_store %arg5[%c0_35, %c1, %c0_36, %c0_37], %97 {strides = array<i32>} : memref<2x3x16x16xf32, #tpu.memory_space<vmem>>, vector<2x1x16x16xf32>,
    %c0_38 = arith.constant 0 : index
    %c2 = arith.constant 2 : index
    %c0_39 = arith.constant 0 : index
    %c0_40 = arith.constant 0 : index
    %98 = vector.load %arg5[%c0_38, %c2, %c0_39, %c0_40] : memref<2x3x16x16xf32, #tpu.memory_space<vmem>>, vector<2x1x16x16xf32>
    %99 = vector.shape_cast %98 : vector<2x1x16x16xf32> to vector<2x16x16xf32>
    %100 = vector.shape_cast %91 : vector<2x16x16xf32> to vector<2x1x16x16xf32>
    tpu.vector_store %arg5[%c0_38, %c2, %c0_39, %c0_40], %100 {strides = array<i32>} : memref<2x3x16x16xf32, #tpu.memory_space<vmem>>, vector<2x1x16x16xf32>,
    return
  }
  func.func @transform_0(%arg0: i32) -> (i32, i32, i32, i32) {
    %c0_i32 = arith.constant 0 : i32
    %c0_i32_0 = arith.constant 0 : i32
    %c0_i32_1 = arith.constant 0 : i32
    %c0_i32_2 = arith.constant 0 : i32
    return %arg0, %c0_i32, %c0_i32_0, %c0_i32_1 : i32, i32, i32, i32
  }
  func.func @transform_1(%arg0: i32) -> (i32, i32, i32, i32) {
    %c0_i32 = arith.constant 0 : i32
    %c0_i32_0 = arith.constant 0 : i32
    %c0_i32_1 = arith.constant 0 : i32
    %c0_i32_2 = arith.constant 0 : i32
    return %arg0, %c0_i32, %c0_i32_0, %c0_i32_1 : i32, i32, i32, i32
  }
  func.func @transform_2(%arg0: i32) -> (i32, i32, i32) {
    %c0_i32 = arith.constant 0 : i32
    %c0_i32_0 = arith.constant 0 : i32
    %c0_i32_1 = arith.constant 0 : i32
    %c0_i32_2 = arith.constant 0 : i32
    return %c0_i32, %c0_i32_0, %c0_i32_1 : i32, i32, i32
  }
  func.func @transform_3(%arg0: i32) -> (i32, i32) {
    %c0_i32 = arith.constant 0 : i32
    %c0_i32_0 = arith.constant 0 : i32
    %c0_i32_1 = arith.constant 0 : i32
    return %c0_i32, %c0_i32_0 : i32, i32
  }
  func.func @transform_4(%arg0: i32) -> (i32, i32, i32, i32) {
    %c0_i32 = arith.constant 0 : i32
    %c0_i32_0 = arith.constant 0 : i32
    %c0_i32_1 = arith.constant 0 : i32
    %c0_i32_2 = arith.constant 0 : i32
    return %arg0, %c0_i32, %c0_i32_0, %c0_i32_1 : i32, i32, i32, i32
  }
}

</mosaic_0001>

<llo_original>
// kernel: tpu_custom_call.1
$region0: #{tpu_custom_call.1}
  #allocation0 [shape = 'u32[]', space=smem, size = 0x4, offset = 0x4, fixed_abs, tag = 'smem constant byte address 0x4 - core index']
  #allocation1 [shape = 'u32[72,128]{1,0:T(1,128)}', space=vmem, size = 0x9000, scoped, tag = 'internal scratch']
  %s0 = inlined_call_operand.hbm [shape: f32[2,3,16,16], index: 0, kind: input, shape index: {}]
  %s1 = inlined_call_operand.hbm [shape: f32[2,3,16,16], index: 1, kind: input, shape index: {}]
  %s2 = inlined_call_operand.hbm [shape: bf16[3,8,16], index: 2, kind: input, shape index: {}]
  %s3 = inlined_call_operand.hbm [shape: bf16[16,16], index: 3, kind: input, shape index: {}]
  %s4 = inlined_call_operand.hbm [shape: f32[2,3,16,16], index: 4, kind: output, shape index: {}]
  %s5 = sld [smem:[#allocation0]]
  $region42: #{tpu_custom_call.1} parent=0
    _
  %s7 = ssub.s32 1, %s5
  %s8 = scalar_select 0, %s7, %s5
  $region1: #{tpu_custom_call.1} parent=0
    #allocation2 [shape = 'u8[49152]{0}', space=vmem, size = 0xc000, scoped, tag = 'input window, operand 0, single buffered']
    #allocation3 [shape = 's32[1]{0}', space=sflag, size = 0x4, scoped, tag = 'scoped memory for tpu_custom_call.1']
    #allocation4 [shape = 's32[1]{0}', space=sflag, size = 0x4, scoped, tag = 'scoped memory for tpu_custom_call.1']
    #allocation5 [shape = 'u8[49152]{0}', space=vmem, size = 0xc000, scoped, tag = 'input window, operand 1, single buffered']
    #allocation6 [shape = 's32[1]{0}', space=sflag, size = 0x4, scoped, tag = 'scoped memory for tpu_custom_call.1']
    #allocation7 [shape = 'u8[6144]{0}', space=vmem, size = 0x1800, scoped, tag = 'input window, operand 2, single buffered']
    #allocation8 [shape = 'u8[4096]{0}', space=vmem, size = 0x1000, scoped, tag = 'input window, operand 3, single buffered']
    #allocation9 [shape = 's32[1]{0}', space=sflag, size = 0x4, scoped, tag = 'scoped memory for tpu_custom_call.1']
    #allocation10 [shape = 'u8[49152]{0}', space=vmem, size = 0xc000, scoped, tag = 'output window, operand 0, single buffered']
    %9 = vsyncpa [#allocation3], 0
    %10 = vsyncpa [#allocation6], 0
    %11 = vsyncpa [#allocation9], 0
    %12 = vsyncpa [#allocation4], 0
    // Predicated region
    $region2: #{tpu_custom_call.1} parent=1 // pred_check
      _
    $region3: #{tpu_custom_call.1} parent=1 // pred_check_branch
      %14 = sbr.rel (0) target = $region5
    $region4: #{tpu_custom_call.1} parent=1 // pred_region
      %16 = vsyncadd [#allocation3], 0
      %s17 = sshll.u32 %s0, 4
      %s18 = int_to_ptr.hbm [resolvable:$true] %s17
      %s19 = sshll.u32 [#allocation2], 4
      %s20 = int_to_ptr.vmem [resolvable:$true] %s19
      %25 = dma.hbm_to_vmem [thread:$0]  %s18, 1536, %s20, [#allocation3], 128, 128, 8
    $region5: #{tpu_custom_call.1} parent=1 // pred_fallthru
      _
    // Predicated region
    $region6: #{tpu_custom_call.1} parent=1 // pred_check
      _
    $region7: #{tpu_custom_call.1} parent=1 // pred_check_branch
      %27 = sbr.rel (0) target = $region9
    $region8: #{tpu_custom_call.1} parent=1 // pred_region
      %29 = vsyncadd [#allocation6], 0
      %s30 = sshll.u32 %s1, 4
      %s31 = int_to_ptr.hbm [resolvable:$true] %s30
      %s32 = sshll.u32 [#allocation5], 4
      %s33 = int_to_ptr.vmem [resolvable:$true] %s32
      %38 = dma.hbm_to_vmem [thread:$0]  %s31, 1536, %s33, [#allocation6], 128, 128, 8
    $region9: #{tpu_custom_call.1} parent=1 // pred_fallthru
      _
    // Predicated region
    $region10: #{tpu_custom_call.1} parent=1 // pred_check
      _
    $region11: #{tpu_custom_call.1} parent=1 // pred_check_branch
      %40 = sbr.rel (0) target = $region13
    $region12: #{tpu_custom_call.1} parent=1 // pred_region
      %42 = vsyncadd [#allocation6], 0
      %s43 = sshll.u32 %s2, 4
      %s44 = int_to_ptr.hbm [resolvable:$true] %s43
      %s45 = sshll.u32 [#allocation7], 4
      %s46 = int_to_ptr.vmem [resolvable:$true] %s45
      %51 = dma.hbm_to_vmem [thread:$0]  %s44, 192, %s46, [#allocation6], 64, 64, 4
    $region13: #{tpu_custom_call.1} parent=1 // pred_fallthru
      _
    // Predicated region
    $region14: #{tpu_custom_call.1} parent=1 // pred_check
      _
    $region15: #{tpu_custom_call.1} parent=1 // pred_check_branch
      %53 = sbr.rel (0) target = $region17
    $region16: #{tpu_custom_call.1} parent=1 // pred_region
      %55 = vsyncadd [#allocation9], 0
      %s56 = sshll.u32 %s3, 4
      %s57 = int_to_ptr.hbm [resolvable:$true] %s56
      %s58 = sshll.u32 [#allocation8], 4
      %s59 = int_to_ptr.vmem [resolvable:$true] %s58
      %64 = dma.hbm_to_vmem [thread:$0]  %s57, 128, %s59, [#allocation9], 64, 64, 4
    $region17: #{tpu_custom_call.1} parent=1 // pred_fallthru
      _
    // Predicated region
    $region18: #{tpu_custom_call.1} parent=1 // pred_check
      _
    $region19: #{tpu_custom_call.1} parent=1 // pred_check_branch
      %66 = sbr.rel (0) target = $region21
    $region20: #{tpu_custom_call.1} parent=1 // pred_region
      %68 = dma.done [#allocation3], 1536
    $region21: #{tpu_custom_call.1} parent=1 // pred_fallthru
      _
    // Predicated region
    $region22: #{tpu_custom_call.1} parent=1 // pred_check
      _
    $region23: #{tpu_custom_call.1} parent=1 // pred_check_branch
      %70 = sbr.rel (0) target = $region25
    $region24: #{tpu_custom_call.1} parent=1 // pred_region
      %72 = dma.done [#allocation6], 1536
    $region25: #{tpu_custom_call.1} parent=1 // pred_fallthru
      _
    // Predicated region
    $region26: #{tpu_custom_call.1} parent=1 // pred_check
      _
    $region27: #{tpu_custom_call.1} parent=1 // pred_check_branch
      %74 = sbr.rel (0) target = $region29
    $region28: #{tpu_custom_call.1} parent=1 // pred_region
      %76 = dma.done [#allocation6], 192
    $region29: #{tpu_custom_call.1} parent=1 // pred_fallthru
      _
    // Predicated region
    $region30: #{tpu_custom_call.1} parent=1 // pred_check
      _
    $region31: #{tpu_custom_call.1} parent=1 // pred_check_branch
      %78 = sbr.rel (0) target = $region33
    $region32: #{tpu_custom_call.1} parent=1 // pred_region
      %80 = dma.done [#allocation9], 128
    $region33: #{tpu_custom_call.1} parent=1 // pred_fallthru
      _
    %v82 = vld [vmem:[#allocation2] sm:$0xff]
    %v83 = vld [vmem:[#allocation2 + $0x8] sm:$0xff]
    %v84 = vld [vmem:[#allocation2 + $0x10] sm:$0xff]
    %v85 = vld [vmem:[#allocation2 + $0x18] sm:$0xff]
    %v86 = vld [vmem:[#allocation2 + $0x20] sm:$0xff]
    %v87 = vld [vmem:[#allocation2 + $0x28] sm:$0xff]
    %v88 = vld [vmem:[#allocation2 + $0x30] sm:$0xff]
    %v89 = vld [vmem:[#allocation2 + $0x38] sm:$0xff]
    %v90 = vld [vmem:[#allocation2 + $0x40] sm:$0xff]
    %v91 = vld [vmem:[#allocation2 + $0x48] sm:$0xff]
    %v92 = vld [vmem:[#allocation2 + $0x50] sm:$0xff]
    %v93 = vld [vmem:[#allocation2 + $0x58] sm:$0xff]
    %v94 = vmul.f32 %v82, 0.299
    %v95 = vmul.f32 %v83, 0.299
    %v96 = vmul.f32 %v88, 0.299
    %v97 = vmul.f32 %v89, 0.299
    %v98 = vmul.f32 %v84, 0.587
    %v99 = vmul.f32 %v85, 0.587
    %v100 = vmul.f32 %v90, 0.587
    %v101 = vmul.f32 %v91, 0.587
    %v102 = vadd.f32 %v94, %v98
    %v103 = vadd.f32 %v95, %v99
    %v104 = vadd.f32 %v96, %v100
    %v105 = vadd.f32 %v97, %v101
    %v106 = vmul.f32 %v86, 0.114
    %v107 = vmul.f32 %v87, 0.114
    %v108 = vmul.f32 %v92, 0.114
    %v109 = vmul.f32 %v93, 0.114
    %v110 = vadd.f32 %v102, %v106
    %v111 = vadd.f32 %v103, %v107
    %v112 = vadd.f32 %v104, %v108
    %v113 = vadd.f32 %v105, %v109
    %v114 = vmul.f32 %v82, -0.14713
    %v115 = vmul.f32 %v83, -0.14713
    %v116 = vmul.f32 %v88, -0.14713
    %v117 = vmul.f32 %v89, -0.14713
    %v118 = vmul.f32 %v84, 0.28886
    %v119 = vmul.f32 %v85, 0.28886
    %v120 = vmul.f32 %v90, 0.28886
    %v121 = vmul.f32 %v91, 0.28886
    %v122 = vsub.f32 %v114, %v118
    %v123 = vsub.f32 %v115, %v119
    %v124 = vsub.f32 %v116, %v120
    %v125 = vsub.f32 %v117, %v121
    %v126 = vmul.f32 %v86, 0.436
    %v127 = vmul.f32 %v87, 0.436
    %v128 = vmul.f32 %v92, 0.436
    %v129 = vmul.f32 %v93, 0.436
    %v130 = vadd.f32 %v122, %v126
    %v131 = vadd.f32 %v123, %v127
    %v132 = vadd.f32 %v124, %v128
    %v133 = vadd.f32 %v125, %v129
    %v134 = vmul.f32 %v82, 0.615
    %v135 = vmul.f32 %v83, 0.615
    %v136 = vmul.f32 %v88, 0.615
    %v137 = vmul.f32 %v89, 0.615
    %v138 = vmul.f32 %v84, 0.51499
    %v139 = vmul.f32 %v85, 0.51499
    %v140 = vmul.f32 %v90, 0.51499
    %v141 = vmul.f32 %v91, 0.51499
    %v142 = vsub.f32 %v134, %v138
    %v143 = vsub.f32 %v135, %v139
    %v144 = vsub.f32 %v136, %v140
    %v145 = vsub.f32 %v137, %v141
    %v146 = vmul.f32 %v86, 0.10001
    %v147 = vmul.f32 %v87, 0.10001
    %v148 = vmul.f32 %v92, 0.10001
    %v149 = vmul.f32 %v93, 0.10001
    %v150 = vsub.f32 %v142, %v146
    %v151 = vsub.f32 %v143, %v147
    %v152 = vsub.f32 %v144, %v148
    %v153 = vsub.f32 %v145, %v149
    %v154 = vld [vmem:[#allocation8] sm:$0xf]
    %v155 = vld [vmem:[#allocation8 + $0x4] sm:$0xf]
    %v156 = vpack.c.bf16 %v111, %v110
    %v157 = vpack.c.bf16 %v113, %v112
    %v158 = vpack.c.bf16 %v131, %v130
    %v159 = vpack.c.bf16 %v133, %v132
    %v160 = vpack.c.bf16 %v151, %v150
    %v161 = vpack.c.bf16 %v153, %v152
    %v164 = vunpack.c.l.b16 %v154
    %v165 = vunpack.c.l.b16 %v155
    %v166 = vpack.c.b16 %v165, %v164
    %vm167 = vcmask 130048
    %v169 = vsel %vm167, %v156, 0
    %v172 = vsel %vm167, %v157, 0
    %v175 = vsel %vm167, %v158, 0
    %v178 = vsel %vm167, %v159, 0
    %v181 = vsel %vm167, %v160, 0
    %v184 = vsel %vm167, %v161, 0
    %v187 = vsel %vm167, %v166, 0
    %189 = vmatpush.bf16.xpose.msra.mxu0 0
    %190 = vmatpush.bf16.xpose.msra.mxu0 0
    %191 = vmatpush.bf16.xpose.msra.mxu0 0
    %192 = vmatpush.bf16.xpose.msra.mxu0 0
    %193 = vmatpush.bf16.xpose.msra.mxu0 0
    %194 = vmatpush.bf16.xpose.msra.mxu0 0
    %195 = vmatpush.bf16.xpose.msra.mxu0 0
    %196 = vmatpush.bf16.xpose.msra.mxu0 %v187
    %197 = vmatmul.bf16.gmra.mxu0 %v169
    %v198 = vpop.f32.mrf.mxu0
    %v199 = vadd.f32 0.0, %v198
    %v200 = vpop.f32.mrf.mxu0
    %v201 = vadd.f32 0.0, %v200
    %202 = vmatmul.bf16.gmra.mxu0 %v172
    %v203 = vpop.f32.mrf.mxu0
    %v204 = vadd.f32 0.0, %v203
    %v205 = vpop.f32.mrf.mxu0
    %v206 = vadd.f32 0.0, %v205
    %207 = vmatmul.bf16.gmra.mxu0 %v175
    %v208 = vpop.f32.mrf.mxu0
    %v209 = vadd.f32 0.0, %v208
    %v210 = vpop.f32.mrf.mxu0
    %v211 = vadd.f32 0.0, %v210
    %212 = vmatmul.bf16.gmra.mxu0 %v178
    %v213 = vpop.f32.mrf.mxu0
    %v214 = vadd.f32 0.0, %v213
    %v215 = vpop.f32.mrf.mxu0
    %v216 = vadd.f32 0.0, %v215
    %217 = vmatmul.bf16.gmra.mxu0 %v181
    %v218 = vpop.f32.mrf.mxu0
    %v219 = vadd.f32 0.0, %v218
    %v220 = vpop.f32.mrf.mxu0
    %v221 = vadd.f32 0.0, %v220
    %222 = vmatmul.bf16.gmra.mxu0 %v184
    %v223 = vpop.f32.mrf.mxu0
    %v224 = vadd.f32 0.0, %v223
    %v225 = vpop.f32.mrf.mxu0
    %v226 = vadd.f32 0.0, %v225
    %227 = vdwg.mxu0
    %228 = vxpose.xlu0.b32.start [1/16] %v199, 128
    %229 = vxpose.xlu0.b32.cont [2/16] %v201, 128
    %230 = vxpose.xlu0.b32.cont [3/16] 0.0, 128
    %231 = vxpose.xlu0.b32.cont [4/16] 0.0, 128
    %232 = vxpose.xlu0.b32.cont [5/16] 0.0, 128
    %233 = vxpose.xlu0.b32.cont [6/16] 0.0, 128
    %234 = vxpose.xlu0.b32.cont [7/16] 0.0, 128
    %235 = vxpose.xlu0.b32.cont [8/16] 0.0, 128
    %236 = vxpose.xlu0.b32.cont [9/16] 0.0, 128
    %237 = vxpose.xlu0.b32.cont [10/16] 0.0, 128
    %238 = vxpose.xlu0.b32.cont [11/16] 0.0, 128
    %239 = vxpose.xlu0.b32.cont [12/16] 0.0, 128
    %240 = vxpose.xlu0.b32.cont [13/16] 0.0, 128
    %241 = vxpose.xlu0.b32.cont [14/16] 0.0, 128
    %242 = vxpose.xlu0.b32.cont [15/16] 0.0, 128
    %243 = vxpose.xlu0.b32.end [16/16] 0.0, 128
    %v244 = vpop.trf.xlu0
    %v245 = vpop.trf.xlu0
    %v246 = vpop.trf.xlu0
    %v247 = vpop.trf.xlu0
    %v248 = vpop.trf.xlu0
    %v249 = vpop.trf.xlu0
    %v250 = vpop.trf.xlu0
    %v251 = vpop.trf.xlu0
    %v252 = vpop.trf.xlu0
    %v253 = vpop.trf.xlu0
    %v254 = vpop.trf.xlu0
    %v255 = vpop.trf.xlu0
    %v256 = vpop.trf.xlu0
    %v257 = vpop.trf.xlu0
    %v258 = vpop.trf.xlu0
    %v259 = vpop.trf.xlu0
    %260 = vxpose.xlu0.b32.start [1/16] %v204, 128
    %261 = vxpose.xlu0.b32.cont [2/16] %v206, 128
    %262 = vxpose.xlu0.b32.cont [3/16] 0.0, 128
    %263 = vxpose.xlu0.b32.cont [4/16] 0.0, 128
    %264 = vxpose.xlu0.b32.cont [5/16] 0.0, 128
    %265 = vxpose.xlu0.b32.cont [6/16] 0.0, 128
    %266 = vxpose.xlu0.b32.cont [7/16] 0.0, 128
    %267 = vxpose.xlu0.b32.cont [8/16] 0.0, 128
    %268 = vxpose.xlu0.b32.cont [9/16] 0.0, 128
    %269 = vxpose.xlu0.b32.cont [10/16] 0.0, 128
    %270 = vxpose.xlu0.b32.cont [11/16] 0.0, 128
    %271 = vxpose.xlu0.b32.cont [12/16] 0.0, 128
    %272 = vxpose.xlu0.b32.cont [13/16] 0.0, 128
    %273 = vxpose.xlu0.b32.cont [14/16] 0.0, 128
    %274 = vxpose.xlu0.b32.cont [15/16] 0.0, 128
    %275 = vxpose.xlu0.b32.end [16/16] 0.0, 128
    %v276 = vpop.trf.xlu0
    %v277 = vpop.trf.xlu0
    %v278 = vpop.trf.xlu0
    %v279 = vpop.trf.xlu0
    %v280 = vpop.trf.xlu0
    %v281 = vpop.trf.xlu0
    %v282 = vpop.trf.xlu0
    %v283 = vpop.trf.xlu0
    %v284 = vpop.trf.xlu0
    %v285 = vpop.trf.xlu0
    %v286 = vpop.trf.xlu0
    %v287 = vpop.trf.xlu0
    %v288 = vpop.trf.xlu0
    %v289 = vpop.trf.xlu0
    %v290 = vpop.trf.xlu0
    %v291 = vpop.trf.xlu0
    %292 = vxpose.xlu0.b32.start [1/16] %v209, 128
    %293 = vxpose.xlu0.b32.cont [2/16] %v211, 128
    %294 = vxpose.xlu0.b32.cont [3/16] 0.0, 128
    %295 = vxpose.xlu0.b32.cont [4/16] 0.0, 128
    %296 = vxpose.xlu0.b32.cont [5/16] 0.0, 128
    %297 = vxpose.xlu0.b32.cont [6/16] 0.0, 128
    %298 = vxpose.xlu0.b32.cont [7/16] 0.0, 128
    %299 = vxpose.xlu0.b32.cont [8/16] 0.0, 128
    %300 = vxpose.xlu0.b32.cont [9/16] 0.0, 128
    %301 = vxpose.xlu0.b32.cont [10/16] 0.0, 128
    %302 = vxpose.xlu0.b32.cont [11/16] 0.0, 128
    %303 = vxpose.xlu0.b32.cont [12/16] 0.0, 128
    %304 = vxpose.xlu0.b32.cont [13/16] 0.0, 128
    %305 = vxpose.xlu0.b32.cont [14/16] 0.0, 128
    %306 = vxpose.xlu0.b32.cont [15/16] 0.0, 128
    %307 = vxpose.xlu0.b32.end [16/16] 0.0, 128
    %v308 = vpop.trf.xlu0
    %v309 = vpop.trf.xlu0
    %v310 = vpop.trf.xlu0
    %v311 = vpop.trf.xlu0
    %v312 = vpop.trf.xlu0
    %v313 = vpop.trf.xlu0
    %v314 = vpop.trf.xlu0
    %v315 = vpop.trf.xlu0
    %v316 = vpop.trf.xlu0
    %v317 = vpop.trf.xlu0
    %v318 = vpop.trf.xlu0
    %v319 = vpop.trf.xlu0
    %v320 = vpop.trf.xlu0
    %v321 = vpop.trf.xlu0
    %v322 = vpop.trf.xlu0
    %v323 = vpop.trf.xlu0
    %324 = vxpose.xlu0.b32.start [1/16] %v214, 128
    %325 = vxpose.xlu0.b32.cont [2/16] %v216, 128
    %326 = vxpose.xlu0.b32.cont [3/16] 0.0, 128
    %327 = vxpose.xlu0.b32.cont [4/16] 0.0, 128
    %328 = vxpose.xlu0.b32.cont [5/16] 0.0, 128
    %329 = vxpose.xlu0.b32.cont [6/16] 0.0, 128
    %330 = vxpose.xlu0.b32.cont [7/16] 0.0, 128
    %331 = vxpose.xlu0.b32.cont [8/16] 0.0, 128
    %332 = vxpose.xlu0.b32.cont [9/16] 0.0, 128
    %333 = vxpose.xlu0.b32.cont [10/16] 0.0, 128
    %334 = vxpose.xlu0.b32.cont [11/16] 0.0, 128
    %335 = vxpose.xlu0.b32.cont [12/16] 0.0, 128
    %336 = vxpose.xlu0.b32.cont [13/16] 0.0, 128
    %337 = vxpose.xlu0.b32.cont [14/16] 0.0, 128
    %338 = vxpose.xlu0.b32.cont [15/16] 0.0, 128
    %339 = vxpose.xlu0.b32.end [16/16] 0.0, 128
    %v340 = vpop.trf.xlu0
    %v341 = vpop.trf.xlu0
    %v342 = vpop.trf.xlu0
    %v343 = vpop.trf.xlu0
    %v344 = vpop.trf.xlu0
    %v345 = vpop.trf.xlu0
    %v346 = vpop.trf.xlu0
    %v347 = vpop.trf.xlu0
    %v348 = vpop.trf.xlu0
    %v349 = vpop.trf.xlu0
    %v350 = vpop.trf.xlu0
    %v351 = vpop.trf.xlu0
    %v352 = vpop.trf.xlu0
    %v353 = vpop.trf.xlu0
    %v354 = vpop.trf.xlu0
    %v355 = vpop.trf.xlu0
    %356 = vxpose.xlu0.b32.start [1/16] %v219, 128
    %357 = vxpose.xlu0.b32.cont [2/16] %v221, 128
    %358 = vxpose.xlu0.b32.cont [3/16] 0.0, 128
    %359 = vxpose.xlu0.b32.cont [4/16] 0.0, 128
    %360 = vxpose.xlu0.b32.cont [5/16] 0.0, 128
    %361 = vxpose.xlu0.b32.cont [6/16] 0.0, 128
    %362 = vxpose.xlu0.b32.cont [7/16] 0.0, 128
    %363 = vxpose.xlu0.b32.cont [8/16] 0.0, 128
    %364 = vxpose.xlu0.b32.cont [9/16] 0.0, 128
    %365 = vxpose.xlu0.b32.cont [10/16] 0.0, 128
    %366 = vxpose.xlu0.b32.cont [11/16] 0.0, 128
    %367 = vxpose.xlu0.b32.cont [12/16] 0.0, 128
    %368 = vxpose.xlu0.b32.cont [13/16] 0.0, 128
    %369 = vxpose.xlu0.b32.cont [14/16] 0.0, 128
    %370 = vxpose.xlu0.b32.cont [15/16] 0.0, 128
    %371 = vxpose.xlu0.b32.end [16/16] 0.0, 128
    %v372 = vpop.trf.xlu0
    %v373 = vpop.trf.xlu0
    %v374 = vpop.trf.xlu0
    %v375 = vpop.trf.xlu0
    %v376 = vpop.trf.xlu0
    %v377 = vpop.trf.xlu0
    %v378 = vpop.trf.xlu0
    %v379 = vpop.trf.xlu0
    %v380 = vpop.trf.xlu0
    %v381 = vpop.trf.xlu0
    %v382 = vpop.trf.xlu0
    %v383 = vpop.trf.xlu0
    %v384 = vpop.trf.xlu0
    %v385 = vpop.trf.xlu0
    %v386 = vpop.trf.xlu0
    %v387 = vpop.trf.xlu0
    %388 = vxpose.xlu0.b32.start [1/16] %v224, 128
    %389 = vxpose.xlu0.b32.cont [2/16] %v226, 128
    %390 = vxpose.xlu0.b32.cont [3/16] 0.0, 128
    %391 = vxpose.xlu0.b32.cont [4/16] 0.0, 128
    %392 = vxpose.xlu0.b32.cont [5/16] 0.0, 128
    %393 = vxpose.xlu0.b32.cont [6/16] 0.0, 128
    %394 = vxpose.xlu0.b32.cont [7/16] 0.0, 128
    %395 = vxpose.xlu0.b32.cont [8/16] 0.0, 128
    %396 = vxpose.xlu0.b32.cont [9/16] 0.0, 128
    %397 = vxpose.xlu0.b32.cont [10/16] 0.0, 128
    %398 = vxpose.xlu0.b32.cont [11/16] 0.0, 128
    %399 = vxpose.xlu0.b32.cont [12/16] 0.0, 128
    %400 = vxpose.xlu0.b32.cont [13/16] 0.0, 128
    %401 = vxpose.xlu0.b32.cont [14/16] 0.0, 128
    %402 = vxpose.xlu0.b32.cont [15/16] 0.0, 128
    %403 = vxpose.xlu0.b32.end [16/16] 0.0, 128
    %v404 = vpop.trf.xlu0
    %v405 = vpop.trf.xlu0
    %v406 = vpop.trf.xlu0
    %v407 = vpop.trf.xlu0
    %v408 = vpop.trf.xlu0
    %v409 = vpop.trf.xlu0
    %v410 = vpop.trf.xlu0
    %v411 = vpop.trf.xlu0
    %v412 = vpop.trf.xlu0
    %v413 = vpop.trf.xlu0
    %v414 = vpop.trf.xlu0
    %v415 = vpop.trf.xlu0
    %v416 = vpop.trf.xlu0
    %v417 = vpop.trf.xlu0
    %v418 = vpop.trf.xlu0
    %v419 = vpop.trf.xlu0
    %v420 = vpack.c.bf16 %v245, %v244
    %v421 = vpack.c.bf16 %v277, %v276
    %v422 = vpack.c.bf16 %v309, %v308
    %v423 = vpack.c.bf16 %v341, %v340
    %v424 = vpack.c.bf16 %v373, %v372
    %v425 = vpack.c.bf16 %v405, %v404
    %v427 = vsel %vm167, %v420, 0
    %v430 = vsel %vm167, %v421, 0
    %v433 = vsel %vm167, %v422, 0
    %v436 = vsel %vm167, %v423, 0
    %v439 = vsel %vm167, %v424, 0
    %v442 = vsel %vm167, %v425, 0
    %444 = vmatpush.bf16.xpose.msra.mxu0 0
    %445 = vmatpush.bf16.xpose.msra.mxu0 0
    %446 = vmatpush.bf16.xpose.msra.mxu0 0
    %447 = vmatpush.bf16.xpose.msra.mxu0 0
    %448 = vmatpush.bf16.xpose.msra.mxu0 0
    %449 = vmatpush.bf16.xpose.msra.mxu0 0
    %450 = vmatpush.bf16.xpose.msra.mxu0 0
    %451 = vmatpush.bf16.xpose.msra.mxu0 %v187
    %452 = vmatmul.bf16.gmra.mxu0 %v427
    %v453 = vpop.f32.mrf.mxu0
    %v454 = vadd.f32 0.0, %v453
    %v455 = vpop.f32.mrf.mxu0
    %v456 = vadd.f32 0.0, %v455
    %457 = vmatmul.bf16.gmra.mxu0 %v430
    %v458 = vpop.f32.mrf.mxu0
    %v459 = vadd.f32 0.0, %v458
    %v460 = vpop.f32.mrf.mxu0
    %v461 = vadd.f32 0.0, %v460
    %462 = vmatmul.bf16.gmra.mxu0 %v433
    %v463 = vpop.f32.mrf.mxu0
    %v464 = vadd.f32 0.0, %v463
    %v465 = vpop.f32.mrf.mxu0
    %v466 = vadd.f32 0.0, %v465
    %467 = vmatmul.bf16.gmra.mxu0 %v436
    %v468 = vpop.f32.mrf.mxu0
    %v469 = vadd.f32 0.0, %v468
    %v470 = vpop.f32.mrf.mxu0
    %v471 = vadd.f32 0.0, %v470
    %472 = vmatmul.bf16.gmra.mxu0 %v439
    %v473 = vpop.f32.mrf.mxu0
    %v474 = vadd.f32 0.0, %v473
    %v475 = vpop.f32.mrf.mxu0
    %v476 = vadd.f32 0.0, %v475
    %477 = vmatmul.bf16.gmra.mxu0 %v442
    %v478 = vpop.f32.mrf.mxu0
    %v479 = vadd.f32 0.0, %v478
    %v480 = vpop.f32.mrf.mxu0
    %v481 = vadd.f32 0.0, %v480
    %482 = vdwg.mxu0
    %v483 = vpack.c.bf16 %v454, %v454
    %v484 = vpack.c.bf16 %v456, %v456
    %v485 = vpack.c.bf16 %v459, %v459
    %v486 = vpack.c.bf16 %v461, %v461
    %v487 = vpack.c.bf16 %v464, %v464
    %v488 = vpack.c.bf16 %v466, %v466
    %v489 = vpack.c.bf16 %v469, %v469
    %v490 = vpack.c.bf16 %v471, %v471
    %v491 = vpack.c.bf16 %v474, %v474
    %v492 = vpack.c.bf16 %v476, %v476
    %v493 = vpack.c.bf16 %v479, %v479
    %v494 = vpack.c.bf16 %v481, %v481
    %v495 = vld [vmem:[#allocation7] sm:$0xf]
    %v496 = vld [vmem:[#allocation7 + $0x4] sm:$0xf]
    %v497 = vld [vmem:[#allocation7 + $0x8] sm:$0xf]
    %v498 = vunpack.c.l.bf16 %v483
    %v499 = vunpack.c.l.bf16 %v484
    %v500 = vunpack.c.l.bf16 %v485
    %v501 = vunpack.c.l.bf16 %v486
    %v502 = vunpack.c.l.bf16 %v487
    %v503 = vunpack.c.l.bf16 %v488
    %v504 = vunpack.c.l.bf16 %v489
    %v505 = vunpack.c.l.bf16 %v490
    %v506 = vunpack.c.l.bf16 %v491
    %v507 = vunpack.c.l.bf16 %v492
    %v508 = vunpack.c.l.bf16 %v493
    %v509 = vunpack.c.l.bf16 %v494
    %v510 = vunpack.c.l.bf16 %v495
    %v511 = vunpack.c.l.bf16 %v496
    %v512 = vunpack.c.l.bf16 %v497
    %v513 = vmul.f32 %v498, %v510
    %v514 = vmul.f32 %v499, %v510
    %v515 = vmul.f32 %v500, %v510
    %v516 = vmul.f32 %v501, %v510
    %v517 = vmul.f32 %v502, %v511
    %v518 = vmul.f32 %v503, %v511
    %v519 = vmul.f32 %v504, %v511
    %v520 = vmul.f32 %v505, %v511
    %v521 = vmul.f32 %v506, %v512
    %v522 = vmul.f32 %v507, %v512
    %v523 = vmul.f32 %v508, %v512
    %v524 = vmul.f32 %v509, %v512
    %v525 = vpack.c.bf16 %v513, %v513
    %v526 = vpack.c.bf16 %v514, %v514
    %v527 = vpack.c.bf16 %v515, %v515
    %v528 = vpack.c.bf16 %v516, %v516
    %v529 = vpack.c.bf16 %v517, %v517
    %v530 = vpack.c.bf16 %v518, %v518
    %v531 = vpack.c.bf16 %v519, %v519
    %v532 = vpack.c.bf16 %v520, %v520
    %v533 = vpack.c.bf16 %v521, %v521
    %v534 = vpack.c.bf16 %v522, %v522
    %v535 = vpack.c.bf16 %v523, %v523
    %v536 = vpack.c.bf16 %v524, %v524
    %v549 = vunpack.c.l.b16 %v525
    %v550 = vunpack.c.l.b16 %v526
    %v551 = vunpack.c.l.b16 %v527
    %v552 = vunpack.c.l.b16 %v528
    %v553 = vunpack.c.l.b16 %v529
    %v554 = vunpack.c.l.b16 %v530
    %v555 = vunpack.c.l.b16 %v531
    %v556 = vunpack.c.l.b16 %v532
    %v557 = vunpack.c.l.b16 %v533
    %v558 = vunpack.c.l.b16 %v534
    %v559 = vunpack.c.l.b16 %v535
    %v560 = vunpack.c.l.b16 %v536
    %v561 = vpack.c.b16 %v550, %v549
    %v562 = vpack.c.b16 %v552, %v551
    %v563 = vpack.c.b16 %v554, %v553
    %v564 = vpack.c.b16 %v556, %v555
    %v565 = vpack.c.b16 %v558, %v557
    %v566 = vpack.c.b16 %v560, %v559
    %v569 = vsel %vm167, %v561, 0
    %v572 = vsel %vm167, %v562, 0
    %v575 = vsel %vm167, %v563, 0
    %v578 = vsel %vm167, %v564, 0
    %v581 = vsel %vm167, %v565, 0
    %v584 = vsel %vm167, %v566, 0
    %586 = vmatpush.bf16.msra.mxu0 0
    %587 = vmatpush.bf16.msra.mxu0 0
    %588 = vmatpush.bf16.msra.mxu0 0
    %589 = vmatpush.bf16.msra.mxu0 0
    %590 = vmatpush.bf16.msra.mxu0 0
    %591 = vmatpush.bf16.msra.mxu0 0
    %592 = vmatpush.bf16.msra.mxu0 0
    %593 = vmatpush.bf16.msra.mxu0 %v166
    %594 = vmatmul.bf16.gmra.mxu0 %v569
    %v595 = vpop.f32.mrf.mxu0
    %v596 = vadd.f32 0.0, %v595
    %v597 = vpop.f32.mrf.mxu0
    %v598 = vadd.f32 0.0, %v597
    %599 = vmatmul.bf16.gmra.mxu0 %v572
    %v600 = vpop.f32.mrf.mxu0
    %v601 = vadd.f32 0.0, %v600
    %v602 = vpop.f32.mrf.mxu0
    %v603 = vadd.f32 0.0, %v602
    %604 = vmatmul.bf16.gmra.mxu0 %v575
    %v605 = vpop.f32.mrf.mxu0
    %v606 = vadd.f32 0.0, %v605
    %v607 = vpop.f32.mrf.mxu0
    %v608 = vadd.f32 0.0, %v607
    %609 = vmatmul.bf16.gmra.mxu0 %v578
    %v610 = vpop.f32.mrf.mxu0
    %v611 = vadd.f32 0.0, %v610
    %v612 = vpop.f32.mrf.mxu0
    %v613 = vadd.f32 0.0, %v612
    %614 = vmatmul.bf16.gmra.mxu0 %v581
    %v615 = vpop.f32.mrf.mxu0
    %v616 = vadd.f32 0.0, %v615
    %v617 = vpop.f32.mrf.mxu0
    %v618 = vadd.f32 0.0, %v617
    %619 = vmatmul.bf16.gmra.mxu0 %v584
    %v620 = vpop.f32.mrf.mxu0
    %v621 = vadd.f32 0.0, %v620
    %v622 = vpop.f32.mrf.mxu0
    %v623 = vadd.f32 0.0, %v622
    %624 = vdwg.mxu0
    %625 = vxpose.xlu0.b32.start [1/16] %v596, 128
    %626 = vxpose.xlu0.b32.cont [2/16] %v598, 128
    %627 = vxpose.xlu0.b32.cont [3/16] 0.0, 128
    %628 = vxpose.xlu0.b32.cont [4/16] 0.0, 128
    %629 = vxpose.xlu0.b32.cont [5/16] 0.0, 128
    %630 = vxpose.xlu0.b32.cont [6/16] 0.0, 128
    %631 = vxpose.xlu0.b32.cont [7/16] 0.0, 128
    %632 = vxpose.xlu0.b32.cont [8/16] 0.0, 128
    %633 = vxpose.xlu0.b32.cont [9/16] 0.0, 128
    %634 = vxpose.xlu0.b32.cont [10/16] 0.0, 128
    %635 = vxpose.xlu0.b32.cont [11/16] 0.0, 128
    %636 = vxpose.xlu0.b32.cont [12/16] 0.0, 128
    %637 = vxpose.xlu0.b32.cont [13/16] 0.0, 128
    %638 = vxpose.xlu0.b32.cont [14/16] 0.0, 128
    %639 = vxpose.xlu0.b32.cont [15/16] 0.0, 128
    %640 = vxpose.xlu0.b32.end [16/16] 0.0, 128
    %v641 = vpop.trf.xlu0
    %v642 = vpop.trf.xlu0
    %v643 = vpop.trf.xlu0
    %v644 = vpop.trf.xlu0
    %v645 = vpop.trf.xlu0
    %v646 = vpop.trf.xlu0
    %v647 = vpop.trf.xlu0
    %v648 = vpop.trf.xlu0
    %v649 = vpop.trf.xlu0
    %v650 = vpop.trf.xlu0
    %v651 = vpop.trf.xlu0
    %v652 = vpop.trf.xlu0
    %v653 = vpop.trf.xlu0
    %v654 = vpop.trf.xlu0
    %v655 = vpop.trf.xlu0
    %v656 = vpop.trf.xlu0
    %657 = vxpose.xlu0.b32.start [1/16] %v601, 128
    %658 = vxpose.xlu0.b32.cont [2/16] %v603, 128
    %659 = vxpose.xlu0.b32.cont [3/16] 0.0, 128
    %660 = vxpose.xlu0.b32.cont [4/16] 0.0, 128
    %661 = vxpose.xlu0.b32.cont [5/16] 0.0, 128
    %662 = vxpose.xlu0.b32.cont [6/16] 0.0, 128
    %663 = vxpose.xlu0.b32.cont [7/16] 0.0, 128
    %664 = vxpose.xlu0.b32.cont [8/16] 0.0, 128
    %665 = vxpose.xlu0.b32.cont [9/16] 0.0, 128
    %666 = vxpose.xlu0.b32.cont [10/16] 0.0, 128
    %667 = vxpose.xlu0.b32.cont [11/16] 0.0, 128
    %668 = vxpose.xlu0.b32.cont [12/16] 0.0, 128
    %669 = vxpose.xlu0.b32.cont [13/16] 0.0, 128
    %670 = vxpose.xlu0.b32.cont [14/16] 0.0, 128
    %671 = vxpose.xlu0.b32.cont [15/16] 0.0, 128
    %672 = vxpose.xlu0.b32.end [16/16] 0.0, 128
    %v673 = vpop.trf.xlu0
    %v674 = vpop.trf.xlu0
    %v675 = vpop.trf.xlu0
    %v676 = vpop.trf.xlu0
    %v677 = vpop.trf.xlu0
    %v678 = vpop.trf.xlu0
    %v679 = vpop.trf.xlu0
    %v680 = vpop.trf.xlu0
    %v681 = vpop.trf.xlu0
    %v682 = vpop.trf.xlu0
    %v683 = vpop.trf.xlu0
    %v684 = vpop.trf.xlu0
    %v685 = vpop.trf.xlu0
    %v686 = vpop.trf.xlu0
    %v687 = vpop.trf.xlu0
    %v688 = vpop.trf.xlu0
    %689 = vxpose.xlu0.b32.start [1/16] %v606, 128
    %690 = vxpose.xlu0.b32.cont [2/16] %v608, 128
    %691 = vxpose.xlu0.b32.cont [3/16] 0.0, 128
    %692 = vxpose.xlu0.b32.cont [4/16] 0.0, 128
    %693 = vxpose.xlu0.b32.cont [5/16] 0.0, 128
    %694 = vxpose.xlu0.b32.cont [6/16] 0.0, 128
    %695 = vxpose.xlu0.b32.cont [7/16] 0.0, 128
    %696 = vxpose.xlu0.b32.cont [8/16] 0.0, 128
    %697 = vxpose.xlu0.b32.cont [9/16] 0.0, 128
    %698 = vxpose.xlu0.b32.cont [10/16] 0.0, 128
    %699 = vxpose.xlu0.b32.cont [11/16] 0.0, 128
    %700 = vxpose.xlu0.b32.cont [12/16] 0.0, 128
    %701 = vxpose.xlu0.b32.cont [13/16] 0.0, 128
    %702 = vxpose.xlu0.b32.cont [14/16] 0.0, 128
    %703 = vxpose.xlu0.b32.cont [15/16] 0.0, 128
    %704 = vxpose.xlu0.b32.end [16/16] 0.0, 128
    %v705 = vpop.trf.xlu0
    %v706 = vpop.trf.xlu0
    %v707 = vpop.trf.xlu0
    %v708 = vpop.trf.xlu0
    %v709 = vpop.trf.xlu0
    %v710 = vpop.trf.xlu0
    %v711 = vpop.trf.xlu0
    %v712 = vpop.trf.xlu0
    %v713 = vpop.trf.xlu0
    %v714 = vpop.trf.xlu0
    %v715 = vpop.trf.xlu0
    %v716 = vpop.trf.xlu0
    %v717 = vpop.trf.xlu0
    %v718 = vpop.trf.xlu0
    %v719 = vpop.trf.xlu0
    %v720 = vpop.trf.xlu0
    %721 = vxpose.xlu0.b32.start [1/16] %v611, 128
    %722 = vxpose.xlu0.b32.cont [2/16] %v613, 128
    %723 = vxpose.xlu0.b32.cont [3/16] 0.0, 128
    %724 = vxpose.xlu0.b32.cont [4/16] 0.0, 128
    %725 = vxpose.xlu0.b32.cont [5/16] 0.0, 128
    %726 = vxpose.xlu0.b32.cont [6/16] 0.0, 128
    %727 = vxpose.xlu0.b32.cont [7/16] 0.0, 128
    %728 = vxpose.xlu0.b32.cont [8/16] 0.0, 128
    %729 = vxpose.xlu0.b32.cont [9/16] 0.0, 128
    %730 = vxpose.xlu0.b32.cont [10/16] 0.0, 128
    %731 = vxpose.xlu0.b32.cont [11/16] 0.0, 128
    %732 = vxpose.xlu0.b32.cont [12/16] 0.0, 128
    %733 = vxpose.xlu0.b32.cont [13/16] 0.0, 128
    %734 = vxpose.xlu0.b32.cont [14/16] 0.0, 128
    %735 = vxpose.xlu0.b32.cont [15/16] 0.0, 128
    %736 = vxpose.xlu0.b32.end [16/16] 0.0, 128
    %v737 = vpop.trf.xlu0
    %v738 = vpop.trf.xlu0
    %v739 = vpop.trf.xlu0
    %v740 = vpop.trf.xlu0
    %v741 = vpop.trf.xlu0
    %v742 = vpop.trf.xlu0
    %v743 = vpop.trf.xlu0
    %v744 = vpop.trf.xlu0
    %v745 = vpop.trf.xlu0
    %v746 = vpop.trf.xlu0
    %v747 = vpop.trf.xlu0
    %v748 = vpop.trf.xlu0
    %v749 = vpop.trf.xlu0
    %v750 = vpop.trf.xlu0
    %v751 = vpop.trf.xlu0
    %v752 = vpop.trf.xlu0
    %753 = vxpose.xlu0.b32.start [1/16] %v616, 128
    %754 = vxpose.xlu0.b32.cont [2/16] %v618, 128
    %755 = vxpose.xlu0.b32.cont [3/16] 0.0, 128
    %756 = vxpose.xlu0.b32.cont [4/16] 0.0, 128
    %757 = vxpose.xlu0.b32.cont [5/16] 0.0, 128
    %758 = vxpose.xlu0.b32.cont [6/16] 0.0, 128
    %759 = vxpose.xlu0.b32.cont [7/16] 0.0, 128
    %760 = vxpose.xlu0.b32.cont [8/16] 0.0, 128
    %761 = vxpose.xlu0.b32.cont [9/16] 0.0, 128
    %762 = vxpose.xlu0.b32.cont [10/16] 0.0, 128
    %763 = vxpose.xlu0.b32.cont [11/16] 0.0, 128
    %764 = vxpose.xlu0.b32.cont [12/16] 0.0, 128
    %765 = vxpose.xlu0.b32.cont [13/16] 0.0, 128
    %766 = vxpose.xlu0.b32.cont [14/16] 0.0, 128
    %767 = vxpose.xlu0.b32.cont [15/16] 0.0, 128
    %768 = vxpose.xlu0.b32.end [16/16] 0.0, 128
    %v769 = vpop.trf.xlu0
    %v770 = vpop.trf.xlu0
    %v771 = vpop.trf.xlu0
    %v772 = vpop.trf.xlu0
    %v773 = vpop.trf.xlu0
    %v774 = vpop.trf.xlu0
    %v775 = vpop.trf.xlu0
    %v776 = vpop.trf.xlu0
    %v777 = vpop.trf.xlu0
    %v778 = vpop.trf.xlu0
    %v779 = vpop.trf.xlu0
    %v780 = vpop.trf.xlu0
    %v781 = vpop.trf.xlu0
    %v782 = vpop.trf.xlu0
    %v783 = vpop.trf.xlu0
    %v784 = vpop.trf.xlu0
    %785 = vxpose.xlu0.b32.start [1/16] %v621, 128
    %786 = vxpose.xlu0.b32.cont [2/16] %v623, 128
    %787 = vxpose.xlu0.b32.cont [3/16] 0.0, 128
    %788 = vxpose.xlu0.b32.cont [4/16] 0.0, 128
    %789 = vxpose.xlu0.b32.cont [5/16] 0.0, 128
    %790 = vxpose.xlu0.b32.cont [6/16] 0.0, 128
    %791 = vxpose.xlu0.b32.cont [7/16] 0.0, 128
    %792 = vxpose.xlu0.b32.cont [8/16] 0.0, 128
    %793 = vxpose.xlu0.b32.cont [9/16] 0.0, 128
    %794 = vxpose.xlu0.b32.cont [10/16] 0.0, 128
    %795 = vxpose.xlu0.b32.cont [11/16] 0.0, 128
    %796 = vxpose.xlu0.b32.cont [12/16] 0.0, 128
    %797 = vxpose.xlu0.b32.cont [13/16] 0.0, 128
    %798 = vxpose.xlu0.b32.cont [14/16] 0.0, 128
    %799 = vxpose.xlu0.b32.cont [15/16] 0.0, 128
    %800 = vxpose.xlu0.b32.end [16/16] 0.0, 128
    %v801 = vpop.trf.xlu0
    %v802 = vpop.trf.xlu0
    %v803 = vpop.trf.xlu0
    %v804 = vpop.trf.xlu0
    %v805 = vpop.trf.xlu0
    %v806 = vpop.trf.xlu0
    %v807 = vpop.trf.xlu0
    %v808 = vpop.trf.xlu0
    %v809 = vpop.trf.xlu0
    %v810 = vpop.trf.xlu0
    %v811 = vpop.trf.xlu0
    %v812 = vpop.trf.xlu0
    %v813 = vpop.trf.xlu0
    %v814 = vpop.trf.xlu0
    %v815 = vpop.trf.xlu0
    %v816 = vpop.trf.xlu0
    %v817 = vpack.c.bf16 %v642, %v641
    %v818 = vpack.c.bf16 %v674, %v673
    %v819 = vpack.c.bf16 %v706, %v705
    %v820 = vpack.c.bf16 %v738, %v737
    %v821 = vpack.c.bf16 %v770, %v769
    %v822 = vpack.c.bf16 %v802, %v801
    %v824 = vsel %vm167, %v817, 0
    %v827 = vsel %vm167, %v818, 0
    %v830 = vsel %vm167, %v819, 0
    %v833 = vsel %vm167, %v820, 0
    %v836 = vsel %vm167, %v821, 0
    %v839 = vsel %vm167, %v822, 0
    %841 = vmatpush.bf16.msra.mxu0 0
    %842 = vmatpush.bf16.msra.mxu0 0
    %843 = vmatpush.bf16.msra.mxu0 0
    %844 = vmatpush.bf16.msra.mxu0 0
    %845 = vmatpush.bf16.msra.mxu0 0
    %846 = vmatpush.bf16.msra.mxu0 0
    %847 = vmatpush.bf16.msra.mxu0 0
    %848 = vmatpush.bf16.msra.mxu0 %v166
    %849 = vmatmul.bf16.gmra.mxu0 %v824
    %v850 = vpop.f32.mrf.mxu0
    %v851 = vadd.f32 0.0, %v850
    %v852 = vpop.f32.mrf.mxu0
    %v853 = vadd.f32 0.0, %v852
    %854 = vmatmul.bf16.gmra.mxu0 %v827
    %v855 = vpop.f32.mrf.mxu0
    %v856 = vadd.f32 0.0, %v855
    %v857 = vpop.f32.mrf.mxu0
    %v858 = vadd.f32 0.0, %v857
    %859 = vmatmul.bf16.gmra.mxu0 %v830
    %v860 = vpop.f32.mrf.mxu0
    %v861 = vadd.f32 0.0, %v860
    %v862 = vpop.f32.mrf.mxu0
    %v863 = vadd.f32 0.0, %v862
    %864 = vmatmul.bf16.gmra.mxu0 %v833
    %v865 = vpop.f32.mrf.mxu0
    %v866 = vadd.f32 0.0, %v865
    %v867 = vpop.f32.mrf.mxu0
    %v868 = vadd.f32 0.0, %v867
    %869 = vmatmul.bf16.gmra.mxu0 %v836
    %v870 = vpop.f32.mrf.mxu0
    %v871 = vadd.f32 0.0, %v870
    %v872 = vpop.f32.mrf.mxu0
    %v873 = vadd.f32 0.0, %v872
    %874 = vmatmul.bf16.gmra.mxu0 %v839
    %v875 = vpop.f32.mrf.mxu0
    %v876 = vadd.f32 0.0, %v875
    %v877 = vpop.f32.mrf.mxu0
    %v878 = vadd.f32 0.0, %v877
    %879 = vdwg.mxu0
    %v880 = vld [vmem:[#allocation5] sm:$0xff]
    %v881 = vld [vmem:[#allocation5 + $0x8] sm:$0xff]
    %v882 = vld [vmem:[#allocation5 + $0x10] sm:$0xff]
    %v883 = vld [vmem:[#allocation5 + $0x18] sm:$0xff]
    %v884 = vld [vmem:[#allocation5 + $0x20] sm:$0xff]
    %v885 = vld [vmem:[#allocation5 + $0x28] sm:$0xff]
    %v886 = vld [vmem:[#allocation5 + $0x30] sm:$0xff]
    %v887 = vld [vmem:[#allocation5 + $0x38] sm:$0xff]
    %v888 = vld [vmem:[#allocation5 + $0x40] sm:$0xff]
    %v889 = vld [vmem:[#allocation5 + $0x48] sm:$0xff]
    %v890 = vld [vmem:[#allocation5 + $0x50] sm:$0xff]
    %v891 = vld [vmem:[#allocation5 + $0x58] sm:$0xff]
    %v892 = vmul.f32 %v871, 1.13983
    %v893 = vmul.f32 %v873, 1.13983
    %v894 = vmul.f32 %v876, 1.13983
    %v895 = vmul.f32 %v878, 1.13983
    %v896 = vadd.f32 %v851, %v892
    %v897 = vadd.f32 %v853, %v893
    %v898 = vadd.f32 %v856, %v894
    %v899 = vadd.f32 %v858, %v895
    %v900 = vmul.f32 %v880, 0.05
    %v901 = vmul.f32 %v881, 0.05
    %v902 = vmul.f32 %v886, 0.05
    %v903 = vmul.f32 %v887, 0.05
    %v904 = vadd.f32 %v896, %v900
    %v905 = vadd.f32 %v897, %v901
    %v906 = vadd.f32 %v898, %v902
    %v907 = vadd.f32 %v899, %v903
    %v908 = vmul.f32 %v861, 0.39465
    %v909 = vmul.f32 %v863, 0.39465
    %v910 = vmul.f32 %v866, 0.39465
    %v911 = vmul.f32 %v868, 0.39465
    %v912 = vsub.f32 %v851, %v908
    %v913 = vsub.f32 %v853, %v909
    %v914 = vsub.f32 %v856, %v910
    %v915 = vsub.f32 %v858, %v911
    %v916 = vmul.f32 %v871, 0.5806
    %v917 = vmul.f32 %v873, 0.5806
    %v918 = vmul.f32 %v876, 0.5806
    %v919 = vmul.f32 %v878, 0.5806
    %v920 = vsub.f32 %v912, %v916
    %v921 = vsub.f32 %v913, %v917
    %v922 = vsub.f32 %v914, %v918
    %v923 = vsub.f32 %v915, %v919
    %v924 = vmul.f32 %v882, 0.05
    %v925 = vmul.f32 %v883, 0.05
    %v926 = vmul.f32 %v888, 0.05
    %v927 = vmul.f32 %v889, 0.05
    %v928 = vadd.f32 %v920, %v924
    %v929 = vadd.f32 %v921, %v925
    %v930 = vadd.f32 %v922, %v926
    %v931 = vadd.f32 %v923, %v927
    %v932 = vmul.f32 %v861, 2.03211
    %v933 = vmul.f32 %v863, 2.03211
    %v934 = vmul.f32 %v866, 2.03211
    %v935 = vmul.f32 %v868, 2.03211
    %v936 = vadd.f32 %v851, %v932
    %v937 = vadd.f32 %v853, %v933
    %v938 = vadd.f32 %v856, %v934
    %v939 = vadd.f32 %v858, %v935
    %v940 = vmul.f32 %v884, 0.05
    %v941 = vmul.f32 %v885, 0.05
    %v942 = vmul.f32 %v890, 0.05
    %v943 = vmul.f32 %v891, 0.05
    %v944 = vadd.f32 %v936, %v940
    %v945 = vadd.f32 %v937, %v941
    %v946 = vadd.f32 %v938, %v942
    %v947 = vadd.f32 %v939, %v943
    %948 = vst.msk [vmem:[#allocation10] sm:$0xff] %vm167, %v904
    %949 = vst.msk [vmem:[#allocation10 + $0x8] sm:$0xff] %vm167, %v905
    %950 = vst.msk [vmem:[#allocation10 + $0x30] sm:$0xff] %vm167, %v906
    %951 = vst.msk [vmem:[#allocation10 + $0x38] sm:$0xff] %vm167, %v907
    %s952 = scalar_lea.vmem [#allocation10], 16
    %953 = vst.msk [vmem:[%s952] sm:$0xff] %vm167, %v928
    %954 = vst.msk [vmem:[%s952 + $0x8] sm:$0xff] %vm167, %v929
    %955 = vst.msk [vmem:[%s952 + $0x30] sm:$0xff] %vm167, %v930
    %956 = vst.msk [vmem:[%s952 + $0x38] sm:$0xff] %vm167, %v931
    %s957 = scalar_lea.vmem [#allocation10], 32
    %958 = vst.msk [vmem:[%s957] sm:$0xff] %vm167, %v944
    %959 = vst.msk [vmem:[%s957 + $0x8] sm:$0xff] %vm167, %v945
    %960 = vst.msk [vmem:[%s957 + $0x30] sm:$0xff] %vm167, %v946
    %961 = vst.msk [vmem:[%s957 + $0x38] sm:$0xff] %vm167, %v947
    // Predicated region
    $region34: #{tpu_custom_call.1} parent=1 // pred_check
      _
    $region35: #{tpu_custom_call.1} parent=1 // pred_check_branch
      %963 = sbr.rel (0) target = $region37
    $region36: #{tpu_custom_call.1} parent=1 // pred_region
      %965 = vsyncadd [#allocation4], 0
      %s966 = sshll.u32 [#allocation10], 4
      %s967 = int_to_ptr.vmem [resolvable:$true] %s966
      %s968 = sshll.u32 %s4, 4
      %s969 = int_to_ptr.hbm [resolvable:$true] %s968
      %974 = dma.vmem_to_hbm [thread:$0]  %s967, 1536, %s969, [#allocation4], 128, 128, 8
    $region37: #{tpu_custom_call.1} parent=1 // pred_fallthru
      _
    // Predicated region
    $region38: #{tpu_custom_call.1} parent=1 // pred_check
      _
    $region39: #{tpu_custom_call.1} parent=1 // pred_check_branch
      %976 = sbr.rel (0) target = $region41
    $region40: #{tpu_custom_call.1} parent=1 // pred_region
      %978 = dma.done [#allocation4], 1536
    $region41: #{tpu_custom_call.1} parent=1 // pred_fallthru
      _
    %979 = vsyncpa [#allocation3], 1
    %980 = vsyncpa [#allocation6], 1
    %981 = vsyncpa [#allocation9], 1
    %982 = vsyncpa [#allocation4], 1

</llo_original>
